<compile_context>
chip_gen: v7x
topology: tpu7x:2x2x1
jax: 0.10.0
libtpu: 0.0.40
codegen_flags: <defaults>
</compile_context>

<pallas_src>
import functools
import math

import jax
import jax.numpy as jnp
from jax.experimental import pallas as pl
from jax.experimental.pallas import tpu as pltpu

EPS = 1e-12  # matches torch.nn.functional.normalize default eps


def _round_up(x, m):
    return ((x + m - 1) // m) * m


def _addmargin_kernel(*refs, scale_factor, margin, use_label, block_c):
    if use_label:
        feat_ref, wt_ref, inv_f_ref, inv_w_ref, label_ref, out_ref = refs
    else:
        feat_ref, wt_ref, inv_f_ref, inv_w_ref, out_ref = refs
        label_ref = None

    # Raw inner products on the MXU: standard (tb, Dp) x (Dp, tc) contraction
    # with f32 accumulation.  Operands are already in the matmul dtype.
    raw = jnp.dot(feat_ref[...], wt_ref[...],
                  preferred_element_type=jnp.float32)          # (tb, tc)

    # cosine * scale as an O(tb*tc) epilogue; inv norms are precomputed in the
    # wrapper and arrive as (tb, 1) / (1, tc) f32 blocks (already row-major, no
    # transpose needed).
    logits = raw * (inv_f_ref[...] * scale_factor) * inv_w_ref[...]

    if use_label:
        tb, tc = logits.shape
        # (labels - class_base) == iota: tb subtractions instead of tb*tc adds.
        rel = label_ref[...] - pl.program_id(1) * block_c       # (tb, 1) int32
        iota = jax.lax.broadcasted_iota(jnp.int32, (tb, tc), 1)
        one_hot = iota == rel                                   # broadcast
        logits = jnp.where(one_hot, logits - margin * scale_factor, logits)

    out_ref[...] = logits.astype(out_ref.dtype)


def add_margin_product(feature, weight, label=None, *,
                       scale_factor=30.0, margin=0.4,
                       block_b=512, block_c=1024, matmul_dtype="auto"):
    """JAX/Pallas equivalent of AddMarginProduct.forward.

    matmul_dtype: "auto" (default) casts f32 operands to bf16 for the MXU
    (accumulation and the norm/scale epilogue stay f32).  Pass jnp.float32 to
    force full-precision matmul.
    """
    B, D = feature.shape
    C, D2 = weight.shape
    assert D == D2

    # ---- hoisted per-row inverse L2 norms (f32, one XLA pass) --------------
    # rsqrt(max(||x||^2, EPS^2)) == 1 / max(||x||, EPS)  (torch F.normalize).
    f32 = feature.astype(jnp.float32)
    w32 = weight.astype(jnp.float32)
    inv_f = jax.lax.rsqrt(
        jnp.maximum(jnp.sum(f32 * f32, axis=-1, keepdims=True), EPS * EPS))   # (B, 1)
    inv_w = jax.lax.rsqrt(
        jnp.maximum(jnp.sum(w32 * w32, axis=-1, keepdims=True), EPS * EPS)).T  # (1, C)

    if matmul_dtype == "auto":
        mm_dtype = jnp.bfloat16 if feature.dtype == jnp.float32 else feature.dtype
    else:
        mm_dtype = matmul_dtype

    feat_mm = feature.astype(mm_dtype)
    # Pre-transposed weight (D, C): standard (M,K)x(K,N) contraction, lane-dense
    # class axis matching the output tile; bf16 halves the streamed HBM bytes.
    wt_mm = weight.astype(mm_dtype).T

    f_bytes = jnp.dtype(mm_dtype).itemsize

    # ---- tile selection, VMEM-aware ----------------------------------------
    tb = min(block_b, _round_up(B, 8))        # sublane-aligned batch tile
    tc = min(block_c, _round_up(C, 128))      # lane-dense class tile
    Dp = _round_up(D, 128)

    try:
        vmem_cap = int(getattr(pltpu.get_tpu_info(), "vmem_capacity_bytes",
                               64 << 20))
    except Exception:
        vmem_cap = 64 << 20                   # conservative (v7x per-TC)
    usable = max(int(vmem_cap * 0.78), 32 << 20)   # ~100 MiB on v5e/v6e, ~50 MiB on v7x
    headroom = 6 << 20

    use_label = label is not None

    def _blocks_bytes(tb_, tc_):
        in_b = (tb_ * Dp * f_bytes            # feature block
                + Dp * tc_ * f_bytes          # weight block
                + tb_ * 4 + tc_ * 4)          # inv_f / inv_w blocks
        if use_label:
            in_b += tb_ * 4
        out_b = tb_ * tc_ * 4
        return 2 * (in_b + out_b)             # double-buffered

    while _blocks_bytes(tb, tc) > usable - headroom and (tb > 8 or tc > 128):
        if Dp * tc * f_bytes >= tb * Dp * f_bytes and tc > 128:
            tc = _round_up(tc // 2, 128)
        elif tb > 8:
            tb = _round_up(tb // 2, 8)
        elif tc > 128:
            tc = _round_up(tc // 2, 128)
        else:
            break
    # TODO(synk): for very large D (>= ~8k) add a third "arbitrary" D grid axis
    # with an f32 VMEM accumulator scratch instead of loading all of Dp per tile.

    Bp = _round_up(B, tb)
    Cp = _round_up(C, tc)

    # ---- padding (padded rows/cols of the inv-norm vectors are zero, so the
    # padded output region is exactly 0 -- no 1/EPS blow-up) ------------------
    feat_p = feat_mm
    if (Bp, Dp) != (B, D):
        feat_p = jnp.pad(feat_mm, ((0, Bp - B), (0, Dp - D)))
    wt_p = wt_mm
    if (Dp, Cp) != (D, C):
        wt_p = jnp.pad(wt_mm, ((0, Dp - D), (0, Cp - C)))
    inv_f_p = inv_f if Bp == B else jnp.pad(inv_f, ((0, Bp - B), (0, 0)))
    inv_w_p = inv_w if Cp == C else jnp.pad(inv_w, ((0, 0), (0, Cp - C)))

    inputs = [feat_p, wt_p, inv_f_p, inv_w_p]
    in_specs = [
        pl.BlockSpec((tb, Dp), lambda i, j: (i, 0)),
        pl.BlockSpec((Dp, tc), lambda i, j: (0, j)),
        pl.BlockSpec((tb, 1), lambda i, j: (i, 0)),
        pl.BlockSpec((1, tc), lambda i, j: (0, j)),
    ]
    if use_label:
        label2d = label.astype(jnp.int32).reshape(B, 1)
        if Bp != B:
            label2d = jnp.pad(label2d, ((0, Bp - B), (0, 0)),
                              constant_values=-1)
        inputs.append(label2d)
        in_specs.append(pl.BlockSpec((tb, 1), lambda i, j: (i, 0)))
    # (inference path: no dummy label input / DMA at all)

    kernel = functools.partial(
        _addmargin_kernel,
        scale_factor=scale_factor, margin=margin,
        use_label=use_label, block_c=tc)

    grid = (Bp // tb, Cp // tc)
    gb, gc = grid

    need = _blocks_bytes(tb, tc) + headroom
    vmem_limit = min(max(need, 32 << 20), usable)
    vmem_limit = max(vmem_limit, need)        # never under-provision

    cost = pl.CostEstimate(
        flops=2 * Bp * Cp * Dp,
        transcendentals=0,
        bytes_accessed=(Bp * Dp * f_bytes             # feature: once per batch tile
                        + gb * Cp * Dp * f_bytes      # weight: re-streamed per batch tile
                        + Bp * 4 + Cp * 4             # inv norms
                        + Bp * Cp * 4))               # output

    # Note: no pl.Buffered(3) on the weight spec -- after the larger batch tile
    # + bf16 weight streaming the inner step is MXU-bound, not DMA-bound.
    out_p = pl.pallas_call(
        kernel,
        out_shape=jax.ShapeDtypeStruct((Bp, Cp), jnp.float32),
        grid_spec=pltpu.PrefetchScalarGridSpec(
            num_scalar_prefetch=0,
            grid=grid,
            in_specs=in_specs,
            out_specs=pl.BlockSpec((tb, tc), lambda i, j: (i, j)),
        ),
        compiler_params=pltpu.CompilerParams(
            dimension_semantics=("parallel", "parallel"),
            vmem_limit_bytes=vmem_limit),
        cost_estimate=cost,
    )(*inputs)

    if (Bp, Cp) != (B, C):
        out_p = out_p[:B, :C]
    return out_p


def init_weight(key, out_features, in_features):
    # nn.init.kaiming_uniform_(w, a=sqrt(5)) on (out, in):
    # bound = sqrt(6 / ((1 + a^2) * fan_in)) = 1 / sqrt(fan_in)
    bound = 1.0 / math.sqrt(in_features)
    return jax.random.uniform(
        key, (out_features, in_features), jnp.float32, -bound, bound)


if __name__ == "__main__":
    key = jax.random.PRNGKey(0)
    k_feat, k_w, k_lbl = jax.random.split(key, 3)

    batch, in_features, out_features = 8, 32, 16
    feature = jax.random.normal(k_feat, (batch, in_features), jnp.float32)
    weight = init_weight(k_w, out_features, in_features)
    label = jax.random.randint(k_lbl, (batch,), 0, out_features, jnp.int32)

    # Default path (bf16 MXU operands, f32 accumulation + f32 epilogue) for
    # training (with label) and inference (without).
    out_train = add_margin_product(feature, weight, label)
    out_infer = add_margin_product(feature, weight, None)
    # Full-precision MXU path for a tight numerical check.
    out_train_f32 = add_margin_product(feature, weight, label,
                                       matmul_dtype=jnp.float32)
    jax.block_until_ready((out_train, out_infer, out_train_f32))

    # Pure-JAX f32 reference.
    f_n = feature / jnp.maximum(
        jnp.linalg.norm(feature, axis=-1, keepdims=True), EPS)
    w_n = weight / jnp.maximum(
        jnp.linalg.norm(weight, axis=-1, keepdims=True), EPS)
    cosine = f_n @ w_n.T
    one_hot = jax.nn.one_hot(label, out_features, dtype=jnp.bool_)
    ref_train = jnp.where(one_hot, cosine - 0.4, cosine) * 30.0
    ref_infer = cosine * 30.0

    assert out_train.shape == (batch, out_features)
    assert out_infer.shape == (batch, out_features)

    # f32 MXU path matches the exact reference tightly.
    assert jnp.allclose(out_train_f32, ref_train, atol=1e-3, rtol=1e-3)

    # bf16 MXU path: compare against a bf16-operand reference (same rounding),
    # plus a loose sanity check against the exact f32 reference.
    raw_bf16 = jnp.dot(feature.astype(jnp.bfloat16),
                       weight.astype(jnp.bfloat16).T,
                       preferred_element_type=jnp.float32)
    inv_f = 1.0 / jnp.maximum(
        jnp.linalg.norm(feature, axis=-1, keepdims=True), EPS)
    inv_w = 1.0 / jnp.maximum(
        jnp.linalg.norm(weight, axis=-1, keepdims=True), EPS)
    cos_bf16 = raw_bf16 * inv_f * inv_w.T
    ref_train_bf16 = jnp.where(one_hot, cos_bf16 - 0.4, cos_bf16) * 30.0
    ref_infer_bf16 = cos_bf16 * 30.0
    assert jnp.allclose(out_train, ref_train_bf16, atol=2e-2, rtol=2e-2)
    assert jnp.allclose(out_infer, ref_infer_bf16, atol=2e-2, rtol=2e-2)
    assert jnp.allclose(out_train, ref_train, atol=0.3, rtol=0.05)
    assert jnp.allclose(out_infer, ref_infer, atol=0.3, rtol=0.05)

    print("KERNEL_OK")
</pallas_src>

<mosaic_0001>
module attributes {stable_mosaic.version = 11 : i64} {
  func.func @_addmargin_kernel(%arg0: i32, %arg1: i32, %arg2: memref<8x128xbf16, #tpu.memory_space<vmem>>, %arg3: memref<128x128xbf16, #tpu.memory_space<vmem>>, %arg4: memref<8x1xf32, #tpu.memory_space<vmem>>, %arg5: memref<1x128xf32, #tpu.memory_space<vmem>>, %arg6: memref<8x1xi32, #tpu.memory_space<vmem>>, %arg7: memref<8x128xf32, #tpu.memory_space<vmem>>) attributes {dimension_semantics = [#tpu.dimension_semantics<parallel>, #tpu.dimension_semantics<parallel>], iteration_bounds = array<i64: 1, 1>, scalar_prefetch = 0 : i64, scratch_operands = 0 : i64, tpu.core_type = #tpu.core_type<tc>, window_params = [{transform_indices = @transform_0, window_bounds = array<i64: 8, 128>}, {transform_indices = @transform_1, window_bounds = array<i64: 128, 128>}, {transform_indices = @transform_2, window_bounds = array<i64: 8, 1>}, {transform_indices = @transform_3, window_bounds = array<i64: 1, 128>}, {transform_indices = @transform_4, window_bounds = array<i64: 8, 1>}, {transform_indices = @transform_5, window_bounds = array<i64: 8, 128>}]} {
    %c0 = arith.constant 0 : index
    %c0_0 = arith.constant 0 : index
    %0 = vector.load %arg2[%c0, %c0_0] : memref<8x128xbf16, #tpu.memory_space<vmem>>, vector<8x128xbf16>
    %c0_1 = arith.constant 0 : index
    %c0_2 = arith.constant 0 : index
    %1 = vector.load %arg3[%c0_1, %c0_2] : memref<128x128xbf16, #tpu.memory_space<vmem>>, vector<128x128xbf16>
    %cst = arith.constant dense<0.000000e+00> : vector<8x128xf32>
    %2 = tpu.matmul %0, %1, %cst {dimension_numbers = #tpu.dot_dimension_numbers<[1], [0], [0], [1], [0, 0, 1, 1], [], []>} : vector<8x128xbf16>, vector<128x128xbf16>, vector<8x128xf32> -> vector<8x128xf32>
    %c0_3 = arith.constant 0 : index
    %c0_4 = arith.constant 0 : index
    %3 = vector.load %arg4[%c0_3, %c0_4] : memref<8x1xf32, #tpu.memory_space<vmem>>, vector<8x1xf32>
    %cst_5 = arith.constant 3.000000e+01 : f32
    %4 = vector.broadcast %cst_5 : f32 to vector<8x1xf32>
    %5 = arith.mulf %3, %4 : vector<8x1xf32>
    %6 = vector.broadcast %5 : vector<8x1xf32> to vector<8x128xf32>
    %7 = arith.mulf %2, %6 : vector<8x128xf32>
    %c0_6 = arith.constant 0 : index
    %c0_7 = arith.constant 0 : index
    %8 = vector.load %arg5[%c0_6, %c0_7] : memref<1x128xf32, #tpu.memory_space<vmem>>, vector<1x128xf32>
    %9 = vector.broadcast %8 : vector<1x128xf32> to vector<8x128xf32>
    %10 = arith.mulf %7, %9 : vector<8x128xf32>
    %c0_8 = arith.constant 0 : index
    %c0_9 = arith.constant 0 : index
    %11 = vector.load %arg6[%c0_8, %c0_9] : memref<8x1xi32, #tpu.memory_space<vmem>>, vector<8x1xi32>
    %c128_i32 = arith.constant 128 : i32
    %12 = arith.muli %arg1, %c128_i32 : i32
    %13 = vector.broadcast %12 : i32 to vector<8x1xi32>
    %14 = arith.subi %11, %13 : vector<8x1xi32>
    %15 = tpu.iota {dimensions = array<i32: 1>} : vector<8x128xi32>
    %16 = vector.broadcast %14 : vector<8x1xi32> to vector<8x128xi32>
    %17 = arith.cmpi eq, %15, %16 : vector<8x128xi32>
    %cst_10 = arith.constant 1.200000e+01 : f32
    %18 = vector.broadcast %cst_10 : f32 to vector<8x128xf32>
    %19 = arith.subf %10, %18 : vector<8x128xf32>
    %20 = arith.select %17, %19, %10 : vector<8x128xi1>, vector<8x128xf32>
    %c0_11 = arith.constant 0 : index
    %c0_12 = arith.constant 0 : index
    %21 = vector.load %arg7[%c0_11, %c0_12] : memref<8x128xf32, #tpu.memory_space<vmem>>, vector<8x128xf32>
    tpu.vector_store %arg7[%c0_11, %c0_12], %20 {strides = array<i32>} : memref<8x128xf32, #tpu.memory_space<vmem>>, vector<8x128xf32>,
    return
  }
  func.func @transform_0(%arg0: i32, %arg1: i32) -> (i32, i32) {
    %c0_i32 = arith.constant 0 : i32
    %c0_i32_0 = arith.constant 0 : i32
    return %arg0, %c0_i32 : i32, i32
  }
  func.func @transform_1(%arg0: i32, %arg1: i32) -> (i32, i32) {
    %c0_i32 = arith.constant 0 : i32
    %c0_i32_0 = arith.constant 0 : i32
    return %c0_i32, %arg1 : i32, i32
  }
  func.func @transform_2(%arg0: i32, %arg1: i32) -> (i32, i32) {
    %c0_i32 = arith.constant 0 : i32
    %c0_i32_0 = arith.constant 0 : i32
    return %arg0, %c0_i32 : i32, i32
  }
  func.func @transform_3(%arg0: i32, %arg1: i32) -> (i32, i32) {
    %c0_i32 = arith.constant 0 : i32
    %c0_i32_0 = arith.constant 0 : i32
    return %c0_i32, %arg1 : i32, i32
  }
  func.func @transform_4(%arg0: i32, %arg1: i32) -> (i32, i32) {
    %c0_i32 = arith.constant 0 : i32
    %c0_i32_0 = arith.constant 0 : i32
    return %arg0, %c0_i32 : i32, i32
  }
  func.func @transform_5(%arg0: i32, %arg1: i32) -> (i32, i32) {
    %c0_i32 = arith.constant 0 : i32
    return %arg0, %arg1 : i32, i32
  }
}

</mosaic_0001>

<llo_original>
// kernel: tpu_custom_call.1
$region0: #{tpu_custom_call.1}
  #allocation0 [shape = 'u32[]', space=smem, size = 0x4, offset = 0x4, fixed_abs, tag = 'smem constant byte address 0x4 - core index']
  #allocation1 [shape = 'u32[144,128]{1,0:T(1,128)}', space=vmem, size = 0x12000, scoped, tag = 'internal scratch']
  %s0 = inlined_call_operand.vmem [shape: bf16[8,128], index: 0, kind: input, shape index: {}]
  %s1 = inlined_call_operand.hbm [shape: bf16[128,128], index: 1, kind: input, shape index: {}]
  %s2 = inlined_call_operand.vmem [shape: f32[8,1], index: 2, kind: input, shape index: {}]
  %s3 = inlined_call_operand.vmem [shape: f32[1,128], index: 3, kind: input, shape index: {}]
  %s4 = inlined_call_operand.vmem [shape: s32[8,1], index: 4, kind: input, shape index: {}]
  %s5 = inlined_call_operand.hbm [shape: f32[8,128], index: 5, kind: output, shape index: {}]
  %s6 = sld [smem:[#allocation0]]
  $region34: #{tpu_custom_call.1} parent=0
    _
  %s8 = ssub.s32 1, %s6
  %s9 = scalar_select 0, %s8, %s6
  $region1: #{tpu_custom_call.1} parent=0
    #allocation2 [shape = 'u8[32768]{0}', space=vmem, size = 0x8000, scoped, tag = 'input window, operand 1, single buffered']
    #allocation3 [shape = 's32[1]{0}', space=sflag, size = 0x4, scoped, tag = 'scoped memory for tpu_custom_call.1']
    #allocation4 [shape = 's32[1]{0}', space=sflag, size = 0x4, scoped, tag = 'scoped memory for tpu_custom_call.1']
    #allocation5 [shape = 'u8[4096]{0}', space=vmem, size = 0x1000, scoped, tag = 'output window, operand 0, single buffered']
    %10 = vsyncpa [#allocation3], 0
    %11 = vsyncpa [#allocation4], 0
    // Predicated region
    $region2: #{tpu_custom_call.1} parent=1 // pred_check
      _
    $region3: #{tpu_custom_call.1} parent=1 // pred_check_branch
      %13 = sbr.rel (0) target = $region5
    $region4: #{tpu_custom_call.1} parent=1 // pred_region
      _
    $region5: #{tpu_custom_call.1} parent=1 // pred_fallthru
      _
    // Predicated region
    $region6: #{tpu_custom_call.1} parent=1 // pred_check
      _
    $region7: #{tpu_custom_call.1} parent=1 // pred_check_branch
      %15 = sbr.rel (0) target = $region9
    $region8: #{tpu_custom_call.1} parent=1 // pred_region
      %s17 = ssub.s32 1024, 1024
      %18 = vsyncadd [#allocation3], %s17
      %s19 = sshll.u32 [#allocation2], 4
      %s20 = int_to_ptr.vmem [resolvable:$true] %s19
      %25 = dma.hbm_to_vmem [thread:$0]  %s1, 1024, %s20, [#allocation3], 64, 64, 4
    $region9: #{tpu_custom_call.1} parent=1 // pred_fallthru
      _
    // Predicated region
    $region10: #{tpu_custom_call.1} parent=1 // pred_check
      _
    $region11: #{tpu_custom_call.1} parent=1 // pred_check_branch
      %27 = sbr.rel (0) target = $region13
    $region12: #{tpu_custom_call.1} parent=1 // pred_region
      _
    $region13: #{tpu_custom_call.1} parent=1 // pred_fallthru
      _
    // Predicated region
    $region14: #{tpu_custom_call.1} parent=1 // pred_check
      _
    $region15: #{tpu_custom_call.1} parent=1 // pred_check_branch
      %29 = sbr.rel (0) target = $region17
    $region16: #{tpu_custom_call.1} parent=1 // pred_region
      _
    $region17: #{tpu_custom_call.1} parent=1 // pred_fallthru
      _
    // Predicated region
    $region18: #{tpu_custom_call.1} parent=1 // pred_check
      _
    $region19: #{tpu_custom_call.1} parent=1 // pred_check_branch
      %31 = sbr.rel (0) target = $region21
    $region20: #{tpu_custom_call.1} parent=1 // pred_region
      _
    $region21: #{tpu_custom_call.1} parent=1 // pred_fallthru
      _
    // Predicated region
    $region22: #{tpu_custom_call.1} parent=1 // pred_check
      _
    $region23: #{tpu_custom_call.1} parent=1 // pred_check_branch
      %33 = sbr.rel (0) target = $region25
    $region24: #{tpu_custom_call.1} parent=1 // pred_region
      %34 = dma.done [#allocation3], 1024
    $region25: #{tpu_custom_call.1} parent=1 // pred_fallthru
      _
    %v36 = vld [vmem:[%s0] sm:$0xf]
    %v37 = vld [vmem:[#allocation2] sm:$0xf]
    %v38 = vld [vmem:[#allocation2 + $0x4] sm:$0xf]
    %v39 = vld [vmem:[#allocation2 + $0x8] sm:$0xf]
    %v40 = vld [vmem:[#allocation2 + $0xc] sm:$0xf]
    %v41 = vld [vmem:[#allocation2 + $0x10] sm:$0xf]
    %v42 = vld [vmem:[#allocation2 + $0x14] sm:$0xf]
    %v43 = vld [vmem:[#allocation2 + $0x18] sm:$0xf]
    %v44 = vld [vmem:[#allocation2 + $0x1c] sm:$0xf]
    %v45 = vld [vmem:[#allocation2 + $0x20] sm:$0xf]
    %v46 = vld [vmem:[#allocation2 + $0x24] sm:$0xf]
    %v47 = vld [vmem:[#allocation2 + $0x28] sm:$0xf]
    %v48 = vld [vmem:[#allocation2 + $0x2c] sm:$0xf]
    %v49 = vld [vmem:[#allocation2 + $0x30] sm:$0xf]
    %v50 = vld [vmem:[#allocation2 + $0x34] sm:$0xf]
    %v51 = vld [vmem:[#allocation2 + $0x38] sm:$0xf]
    %v52 = vld [vmem:[#allocation2 + $0x3c] sm:$0xf]
    %v69 = vunpack.c.l.b16 %v37
    %v70 = vunpack.c.l.b16 %v38
    %v71 = vunpack.c.l.b16 %v39
    %v72 = vunpack.c.l.b16 %v40
    %v73 = vunpack.c.l.b16 %v41
    %v74 = vunpack.c.l.b16 %v42
    %v75 = vunpack.c.l.b16 %v43
    %v76 = vunpack.c.l.b16 %v44
    %v77 = vunpack.c.l.b16 %v45
    %v78 = vunpack.c.l.b16 %v46
    %v79 = vunpack.c.l.b16 %v47
    %v80 = vunpack.c.l.b16 %v48
    %v81 = vunpack.c.l.b16 %v49
    %v82 = vunpack.c.l.b16 %v50
    %v83 = vunpack.c.l.b16 %v51
    %v84 = vunpack.c.l.b16 %v52
    %v85 = vpack.c.b16 %v70, %v69
    %v86 = vpack.c.b16 %v72, %v71
    %v87 = vpack.c.b16 %v74, %v73
    %v88 = vpack.c.b16 %v76, %v75
    %v89 = vpack.c.b16 %v78, %v77
    %v90 = vpack.c.b16 %v80, %v79
    %v91 = vpack.c.b16 %v82, %v81
    %v92 = vpack.c.b16 %v84, %v83
    %101 = vmatprep.subr.bf16.mxu0 0
    %102 = vmatpush1.bf16.msra.mxu0 %v85
    %103 = vmatprep.subr.bf16.mxu0 0
    %104 = vmatpush1.bf16.msra.mxu0 %v86
    %105 = vmatprep.subr.bf16.mxu0 0
    %106 = vmatpush1.bf16.msra.mxu0 %v87
    %107 = vmatprep.subr.bf16.mxu0 0
    %108 = vmatpush1.bf16.msra.mxu0 %v88
    %109 = vmatprep.subr.bf16.mxu0 0
    %110 = vmatpush1.bf16.msra.mxu0 %v89
    %111 = vmatprep.subr.bf16.mxu0 0
    %112 = vmatpush1.bf16.msra.mxu0 %v90
    %113 = vmatprep.subr.bf16.mxu0 0
    %114 = vmatpush1.bf16.msra.mxu0 %v91
    %115 = vmatprep.subr.bf16.mxu0 0
    %116 = vmatpush1.bf16.msra.mxu0 %v92
    %117 = vmatprep.subr.bf16.mxu0 0
    %118 = vmatpush1.bf16.msra.mxu0 0
    %119 = vmatprep.subr.bf16.mxu0 0
    %120 = vmatpush1.bf16.msra.mxu0 0
    %121 = vmatprep.subr.bf16.mxu0 0
    %122 = vmatpush1.bf16.msra.mxu0 0
    %123 = vmatprep.subr.bf16.mxu0 0
    %124 = vmatpush1.bf16.msra.mxu0 0
    %125 = vmatprep.subr.bf16.mxu0 0
    %126 = vmatpush1.bf16.msra.mxu0 0
    %127 = vmatprep.subr.bf16.mxu0 0
    %128 = vmatpush1.bf16.msra.mxu0 0
    %129 = vmatprep.subr.bf16.mxu0 0
    %130 = vmatpush1.bf16.msra.mxu0 0
    %131 = vmatprep.subr.bf16.mxu0 0
    %132 = vmatpush1.bf16.msra.mxu0 0
    %133 = vmatprep.mubr.bf16.mxu0 0
    %134 = vmatmul.mubr.bf16.gmra.mrb[0].mxu0 %v36
    %v135 = vpop.f32.mrb[0].mxu0
    %v136 = vadd.f32 0.0, %v135
    %v137 = vpop.f32.mrb[0].mxu0
    %v138 = vpop.f32.mrb[0].mxu0
    %v139 = vpop.f32.mrb[0].mxu0
    %140 = vdwg.mxu0
    %v141 = vld [vmem:[%s2] sm:$0xff]
    %v142 = vmul.f32 %v141, 30.0
    %144 = vset.pattern.permute.xlu0 0
    %145 = vperm.xlu0 %144, %v142
    %v146 = vpop.permute.xlu0 %145
    %v148 = vmul.f32 %v136, %v146
    %v149 = vld [vmem:[%s3] sm:$0x1]
    %v151 = vlaneseq
    %v152 = vshrl.u32 %v151, 7
    %v153 = vsub.s32 0, %v152
    %v154 = vrot.slane %v149, %v153
    %v156 = vmul.f32 %v148, %v154
    %v157 = vld [vmem:[%s4] sm:$0xff]
    %s158 = smul.u32 0, 128
    %v159 = vstv %s158
    %v160 = vsub.s32 %v157, %v159
    %v161 = vlaneseq
    %v162 = vand.u32 %v161, 127
    %163 = vset.pattern.permute.xlu0 0
    %164 = vperm.xlu0 %163, %v160
    %v165 = vpop.permute.xlu0 %164
    %vm166 = vcmp.eq.s32.totalorder %v162, %v165
    %v167 = vsub.f32 %v156, 12.0
    %v168 = vsel %vm166, %v167, %v156
    %169 = vst [vmem:[#allocation5] sm:$0xff] %v168
    // Predicated region
    $region26: #{tpu_custom_call.1} parent=1 // pred_check
      _
    $region27: #{tpu_custom_call.1} parent=1 // pred_check_branch
      %171 = sbr.rel (0) target = $region29
    $region28: #{tpu_custom_call.1} parent=1 // pred_region
      %s173 = ssub.s32 128, 128
      %174 = vsyncadd [#allocation4], %s173
      %s176 = sshll.u32 [#allocation5], 4
      %s177 = int_to_ptr.vmem [resolvable:$true] %s176
      %179 = dma.vmem_to_hbm [thread:$0]  %s177, 128, %s5, [#allocation4]
    $region29: #{tpu_custom_call.1} parent=1 // pred_fallthru
      _
    // Predicated region
    $region30: #{tpu_custom_call.1} parent=1 // pred_check
      _
    $region31: #{tpu_custom_call.1} parent=1 // pred_check_branch
      %181 = sbr.rel (0) target = $region33
    $region32: #{tpu_custom_call.1} parent=1 // pred_region
      %182 = dma.done [#allocation4], 128
    $region33: #{tpu_custom_call.1} parent=1 // pred_fallthru
      _
    %183 = vsyncpa [#allocation3], 1
    %184 = vsyncpa [#allocation4], 1

</llo_original>
